<compile_context>
chip_gen: v7x
topology: tpu7x:2x2x1
jax: 0.10.0
libtpu: 0.0.40
codegen_flags: <defaults>
</compile_context>

<pallas_src>
import jax
import jax.numpy as jnp
from jax.experimental import pallas as pl
from jax.experimental.pallas import tpu as pltpu

# Largest batch tile. Per-step VMEM footprint is tiny (x tile 64 KiB, padded
# hidden (TB,128) f32 ~2 MiB at TB=4096), safely under v7x's 32 MiB scoped
# default while being well past the ~512-row knee where per-grid-step overhead
# (~0.35 us) stops mattering for this HBM-bandwidth-bound kernel.
_TB_MAX = 4096
_KERNEL_MIN_BATCH = 256  # below this, fused XLA beats any custom kernel


def _round_up(n, m):
    return ((n + m - 1) // m) * m


def dnn_kernel(x_ref, w1t_ref, b1_ref, w2t_ref, b2_ref, o_ref):
    # fc1: (TB,4) @ (4,50) + b1 as 4 VPU broadcast-FMAs — K=4 through a
    # 128x128/256x256 systolic array is pure push/pop latency for <2% MXU use.
    x = x_ref[...]                      # (TB, 4)
    w1t = w1t_ref[...]                  # (4, 50)
    h = b1_ref[...]                     # (1, 50) -> broadcasts to (TB, 50)
    h = h + x[:, 0:1] * w1t[0:1, :]
    h = h + x[:, 1:2] * w1t[1:2, :]
    h = h + x[:, 2:3] * w1t[2:3, :]
    h = h + x[:, 3:4] * w1t[3:4, :]
    h = jnp.maximum(h, 0.0)
    # fc2: (TB,50) @ (50,2) + b2 on the MXU.
    y = jnp.dot(h, w2t_ref[...], preferred_element_type=jnp.float32) + b2_ref[...]
    o_ref[...] = y.astype(o_ref.dtype)


def _dnn_forward_pallas(x, w1t, b1_2d, w2t, b2_2d):
    B = x.shape[0]
    TB = min(_TB_MAX, _round_up(max(B, 1), 8))
    B_pad = _round_up(B, TB)
    if B_pad != B:
        x = jnp.pad(x, ((0, B_pad - B), (0, 0)))  # tail handling: pad, slice later
    grid = (B_pad // TB,)

    param_bytes = 4 * (w1t.size + b1_2d.size + w2t.size + b2_2d.size)
    cost = pl.CostEstimate(
        flops=int(702 * B_pad),                      # ~400+50+50+200+2 per row
        transcendentals=0,
        bytes_accessed=int(24 * B_pad + param_bytes),  # 16 B in + 8 B out per row
    )

    out = pl.pallas_call(
        dnn_kernel,
        out_shape=jax.ShapeDtypeStruct((B_pad, 2), jnp.float32),
        grid=grid,
        in_specs=[
            pl.BlockSpec((TB, 4), lambda i: (i, 0)),   # x: tiled over batch
            pl.BlockSpec((4, 50), lambda i: (0, 0)),   # w1t: VMEM-resident
            pl.BlockSpec((1, 50), lambda i: (0, 0)),   # b1
            pl.BlockSpec((50, 2), lambda i: (0, 0)),   # w2t
            pl.BlockSpec((1, 2), lambda i: (0, 0)),    # b2
        ],
        out_specs=pl.BlockSpec((TB, 2), lambda i: (i, 0)),
        compiler_params=pltpu.CompilerParams(
            dimension_semantics=("parallel",),  # shard batch steps across v7x's 2 TCs
        ),
        cost_estimate=cost,
    )(x, w1t, b1_2d, w2t, b2_2d)
    return out[:B]


def reference_forward(x, w1, b1, w2, b2):
    h = jnp.maximum(x @ w1.T + b1, 0.0)
    return h @ w2.T + b2


def dnn_forward(x, w1, b1, w2, b2, use_kernel=None):
    """x: (B,4); w1: (50,4); b1: (50,); w2: (2,50); b2: (2,) — PyTorch shapes."""
    B = x.shape[0]
    if use_kernel is None:
        use_kernel = B >= _KERNEL_MIN_BATCH
    if not use_kernel:
        # Tiny batches: pallas_call launch/DMA-setup cost exceeds the ~700
        # flops/row of work; plain XLA is strictly faster here.
        return reference_forward(x, w1, b1, w2, b2)
    # Glue: PyTorch Linear is y = x @ W.T + b — pre-transpose once in the wrapper.
    w1t = jnp.transpose(w1)        # (4, 50)
    w2t = jnp.transpose(w2)        # (50, 2)
    b1_2d = b1.reshape(1, -1)      # (1, 50)
    b2_2d = b2.reshape(1, -1)      # (1, 2)
    return _dnn_forward_pallas(x, w1t, b1_2d, w2t, b2_2d)


if __name__ == "__main__":
    key = jax.random.PRNGKey(0)
    k_x, k_w1, k_b1, k_w2, k_b2, k_x2 = jax.random.split(key, 6)

    # Deterministic parameters matching the module: weights ~ N(0, 0.1).
    w1 = 0.1 * jax.random.normal(k_w1, (50, 4), dtype=jnp.float32)
    b1 = 0.1 * jax.random.normal(k_b1, (50,), dtype=jnp.float32)
    w2 = 0.1 * jax.random.normal(k_w2, (2, 50), dtype=jnp.float32)
    b2 = 0.1 * jax.random.normal(k_b2, (2,), dtype=jnp.float32)

    # 1) Small-shape check (module's nominal use, B=2): force the kernel path.
    B_small = 2
    x_small = jax.random.normal(k_x, (B_small, 4), dtype=jnp.float32)
    out_small = jax.block_until_ready(
        dnn_forward(x_small, w1, b1, w2, b2, use_kernel=True))
    ref_small = reference_forward(x_small, w1, b1, w2, b2)
    assert out_small.shape == (B_small, 2)
    assert jnp.allclose(out_small, ref_small, atol=1e-5, rtol=1e-5)

    # 2) Larger ragged batch: exercises the batch-tiled grid, pipelining and
    #    the padded tail (B=5000 -> TB=4096, grid=2, pad to 8192).
    B_big = 5000
    x_big = jax.random.normal(k_x2, (B_big, 4), dtype=jnp.float32)
    out_big = jax.block_until_ready(dnn_forward(x_big, w1, b1, w2, b2))
    ref_big = reference_forward(x_big, w1, b1, w2, b2)
    assert out_big.shape == (B_big, 2)
    assert jnp.allclose(out_big, ref_big, atol=1e-4, rtol=1e-4)

    print("KERNEL_OK")
</pallas_src>

<mosaic_0001>
module attributes {stable_mosaic.version = 11 : i64} {
  func.func @dnn_kernel(%arg0: i32, %arg1: memref<8x4xf32, #tpu.memory_space<vmem>>, %arg2: memref<4x50xf32, #tpu.memory_space<vmem>>, %arg3: memref<1x50xf32, #tpu.memory_space<vmem>>, %arg4: memref<50x2xf32, #tpu.memory_space<vmem>>, %arg5: memref<1x2xf32, #tpu.memory_space<vmem>>, %arg6: memref<8x2xf32, #tpu.memory_space<vmem>>) attributes {dimension_semantics = [#tpu.dimension_semantics<parallel>], iteration_bounds = array<i64: 1>, scalar_prefetch = 0 : i64, scratch_operands = 0 : i64, tpu.core_type = #tpu.core_type<tc>, window_params = [{transform_indices = @transform_0, window_bounds = array<i64: 8, 4>}, {pipeline_mode = #tpu.pipeline_mode<synchronous>, transform_indices = @transform_1, window_bounds = array<i64: 4, 50>}, {pipeline_mode = #tpu.pipeline_mode<synchronous>, transform_indices = @transform_2, window_bounds = array<i64: 1, 50>}, {pipeline_mode = #tpu.pipeline_mode<synchronous>, transform_indices = @transform_3, window_bounds = array<i64: 50, 2>}, {pipeline_mode = #tpu.pipeline_mode<synchronous>, transform_indices = @transform_4, window_bounds = array<i64: 1, 2>}, {transform_indices = @transform_5, window_bounds = array<i64: 8, 2>}]} {
    %c0 = arith.constant 0 : index
    %c0_0 = arith.constant 0 : index
    %0 = vector.load %arg1[%c0, %c0_0] : memref<8x4xf32, #tpu.memory_space<vmem>>, vector<8x4xf32>
    %c0_1 = arith.constant 0 : index
    %c0_2 = arith.constant 0 : index
    %1 = vector.load %arg2[%c0_1, %c0_2] : memref<4x50xf32, #tpu.memory_space<vmem>>, vector<4x50xf32>
    %c0_3 = arith.constant 0 : index
    %c0_4 = arith.constant 0 : index
    %2 = vector.load %arg3[%c0_3, %c0_4] : memref<1x50xf32, #tpu.memory_space<vmem>>, vector<1x50xf32>
    %3 = vector.extract_strided_slice %0 {offsets = [0, 0], sizes = [8, 1], strides = [1, 1]} : vector<8x4xf32> to vector<8x1xf32>
    %4 = vector.extract_strided_slice %1 {offsets = [0, 0], sizes = [1, 50], strides = [1, 1]} : vector<4x50xf32> to vector<1x50xf32>
    %5 = vector.broadcast %3 : vector<8x1xf32> to vector<8x50xf32>
    %6 = vector.broadcast %4 : vector<1x50xf32> to vector<8x50xf32>
    %7 = arith.mulf %5, %6 : vector<8x50xf32>
    %8 = vector.broadcast %2 : vector<1x50xf32> to vector<8x50xf32>
    %9 = arith.addf %8, %7 : vector<8x50xf32>
    %10 = vector.extract_strided_slice %0 {offsets = [0, 1], sizes = [8, 1], strides = [1, 1]} : vector<8x4xf32> to vector<8x1xf32>
    %11 = vector.extract_strided_slice %1 {offsets = [1, 0], sizes = [1, 50], strides = [1, 1]} : vector<4x50xf32> to vector<1x50xf32>
    %12 = vector.broadcast %10 : vector<8x1xf32> to vector<8x50xf32>
    %13 = vector.broadcast %11 : vector<1x50xf32> to vector<8x50xf32>
    %14 = arith.mulf %12, %13 : vector<8x50xf32>
    %15 = arith.addf %9, %14 : vector<8x50xf32>
    %16 = vector.extract_strided_slice %0 {offsets = [0, 2], sizes = [8, 1], strides = [1, 1]} : vector<8x4xf32> to vector<8x1xf32>
    %17 = vector.extract_strided_slice %1 {offsets = [2, 0], sizes = [1, 50], strides = [1, 1]} : vector<4x50xf32> to vector<1x50xf32>
    %18 = vector.broadcast %16 : vector<8x1xf32> to vector<8x50xf32>
    %19 = vector.broadcast %17 : vector<1x50xf32> to vector<8x50xf32>
    %20 = arith.mulf %18, %19 : vector<8x50xf32>
    %21 = arith.addf %15, %20 : vector<8x50xf32>
    %22 = vector.extract_strided_slice %0 {offsets = [0, 3], sizes = [8, 1], strides = [1, 1]} : vector<8x4xf32> to vector<8x1xf32>
    %23 = vector.extract_strided_slice %1 {offsets = [3, 0], sizes = [1, 50], strides = [1, 1]} : vector<4x50xf32> to vector<1x50xf32>
    %24 = vector.broadcast %22 : vector<8x1xf32> to vector<8x50xf32>
    %25 = vector.broadcast %23 : vector<1x50xf32> to vector<8x50xf32>
    %26 = arith.mulf %24, %25 : vector<8x50xf32>
    %27 = arith.addf %21, %26 : vector<8x50xf32>
    %cst = arith.constant 0.000000e+00 : f32
    %28 = vector.broadcast %cst : f32 to vector<8x50xf32>
    %29 = arith.maximumf %27, %28 : vector<8x50xf32>
    %c0_5 = arith.constant 0 : index
    %c0_6 = arith.constant 0 : index
    %30 = vector.load %arg4[%c0_5, %c0_6] : memref<50x2xf32, #tpu.memory_space<vmem>>, vector<50x2xf32>
    %cst_7 = arith.constant dense<0.000000e+00> : vector<8x2xf32>
    %31 = tpu.matmul %29, %30, %cst_7 {dimension_numbers = #tpu.dot_dimension_numbers<[1], [0], [0], [1], [0, 0, 1, 1], [], []>} : vector<8x50xf32>, vector<50x2xf32>, vector<8x2xf32> -> vector<8x2xf32>
    %c0_8 = arith.constant 0 : index
    %c0_9 = arith.constant 0 : index
    %32 = vector.load %arg5[%c0_8, %c0_9] : memref<1x2xf32, #tpu.memory_space<vmem>>, vector<1x2xf32>
    %33 = vector.broadcast %32 : vector<1x2xf32> to vector<8x2xf32>
    %34 = arith.addf %31, %33 : vector<8x2xf32>
    %c0_10 = arith.constant 0 : index
    %c0_11 = arith.constant 0 : index
    %35 = vector.load %arg6[%c0_10, %c0_11] : memref<8x2xf32, #tpu.memory_space<vmem>>, vector<8x2xf32>
    tpu.vector_store %arg6[%c0_10, %c0_11], %34 {strides = array<i32>} : memref<8x2xf32, #tpu.memory_space<vmem>>, vector<8x2xf32>,
    return
  }
  func.func @transform_0(%arg0: i32) -> (i32, i32) {
    %c0_i32 = arith.constant 0 : i32
    %c0_i32_0 = arith.constant 0 : i32
    return %arg0, %c0_i32 : i32, i32
  }
  func.func @transform_1(%arg0: i32) -> (i32, i32) {
    %c0_i32 = arith.constant 0 : i32
    %c0_i32_0 = arith.constant 0 : i32
    %c0_i32_1 = arith.constant 0 : i32
    return %c0_i32, %c0_i32_0 : i32, i32
  }
  func.func @transform_2(%arg0: i32) -> (i32, i32) {
    %c0_i32 = arith.constant 0 : i32
    %c0_i32_0 = arith.constant 0 : i32
    %c0_i32_1 = arith.constant 0 : i32
    return %c0_i32, %c0_i32_0 : i32, i32
  }
  func.func @transform_3(%arg0: i32) -> (i32, i32) {
    %c0_i32 = arith.constant 0 : i32
    %c0_i32_0 = arith.constant 0 : i32
    %c0_i32_1 = arith.constant 0 : i32
    return %c0_i32, %c0_i32_0 : i32, i32
  }
  func.func @transform_4(%arg0: i32) -> (i32, i32) {
    %c0_i32 = arith.constant 0 : i32
    %c0_i32_0 = arith.constant 0 : i32
    %c0_i32_1 = arith.constant 0 : i32
    return %c0_i32, %c0_i32_0 : i32, i32
  }
  func.func @transform_5(%arg0: i32) -> (i32, i32) {
    %c0_i32 = arith.constant 0 : i32
    %c0_i32_0 = arith.constant 0 : i32
    return %arg0, %c0_i32 : i32, i32
  }
}

</mosaic_0001>

<llo_original>
// kernel: tpu_custom_call.1
$region0: #{tpu_custom_call.1}
  #allocation0 [shape = 'u32[]', space=smem, size = 0x4, offset = 0x4, fixed_abs, tag = 'smem constant byte address 0x4 - core index']
  #allocation1 [shape = 'u32[144,128]{1,0:T(1,128)}', space=vmem, size = 0x12000, scoped, tag = 'internal scratch']
  %s0 = inlined_call_operand.vmem [shape: f32[8,4], index: 0, kind: input, shape index: {}]
  %s1 = inlined_call_operand.vmem [shape: f32[4,50], index: 1, kind: input, shape index: {}]
  %s2 = inlined_call_operand.vmem [shape: f32[1,50], index: 2, kind: input, shape index: {}]
  %s3 = inlined_call_operand.vmem [shape: f32[50,2], index: 3, kind: input, shape index: {}]
  %s4 = inlined_call_operand.vmem [shape: f32[1,2], index: 4, kind: input, shape index: {}]
  %s5 = inlined_call_operand.vmem [shape: f32[8,2], index: 5, kind: output, shape index: {}]
  %s6 = sld [smem:[#allocation0]]
  $region30: #{tpu_custom_call.1} parent=0
    _
  %s8 = ssub.s32 1, %s6
  %s9 = scalar_select 0, %s8, %s6
  // Predicated region
  $region2: #{tpu_custom_call.1} parent=0 // pred_check
    _
  $region3: #{tpu_custom_call.1} parent=0 // pred_check_branch
    %11 = sbr.rel (0) target = $region5
  $region4: #{tpu_custom_call.1} parent=0 // pred_region
    _
  $region5: #{tpu_custom_call.1} parent=0 // pred_fallthru
    _
  // Predicated region
  $region6: #{tpu_custom_call.1} parent=0 // pred_check
    _
  $region7: #{tpu_custom_call.1} parent=0 // pred_check_branch
    %13 = sbr.rel (0) target = $region9
  $region8: #{tpu_custom_call.1} parent=0 // pred_region
    _
  $region9: #{tpu_custom_call.1} parent=0 // pred_fallthru
    _
  // Predicated region
  $region10: #{tpu_custom_call.1} parent=0 // pred_check
    _
  $region11: #{tpu_custom_call.1} parent=0 // pred_check_branch
    %15 = sbr.rel (0) target = $region13
  $region12: #{tpu_custom_call.1} parent=0 // pred_region
    _
  $region13: #{tpu_custom_call.1} parent=0 // pred_fallthru
    _
  // Predicated region
  $region14: #{tpu_custom_call.1} parent=0 // pred_check
    _
  $region15: #{tpu_custom_call.1} parent=0 // pred_check_branch
    %17 = sbr.rel (0) target = $region17
  $region16: #{tpu_custom_call.1} parent=0 // pred_region
    _
  $region17: #{tpu_custom_call.1} parent=0 // pred_fallthru
    _
  // Predicated region
  $region18: #{tpu_custom_call.1} parent=0 // pred_check
    _
  $region19: #{tpu_custom_call.1} parent=0 // pred_check_branch
    %19 = sbr.rel (0) target = $region21
  $region20: #{tpu_custom_call.1} parent=0 // pred_region
    _
  $region21: #{tpu_custom_call.1} parent=0 // pred_fallthru
    _
  %v20 = vld [vmem:[%s0] sm:$0xff]
  %v21 = vld [vmem:[%s1] sm:$0xf]
  %v22 = vld [vmem:[%s2] sm:$0x1]
  %24 = vset.pattern.permute.xlu0 0
  %25 = vperm.xlu0 %24, %v20
  %v26 = vpop.permute.xlu0 %25
  %v28 = vlaneseq
  %v29 = vshrl.u32 %v28, 7
  %v30 = vsub.s32 0, %v29
  %v31 = vrot.slane %v21, %v30
  %v32 = vmul.f32 %v26, %v31
  %v34 = vlaneseq
  %v35 = vshrl.u32 %v34, 7
  %v36 = vsub.s32 0, %v35
  %v37 = vrot.slane %v22, %v36
  %v39 = vadd.f32 %v37, %v32
  %40 = vset.pattern.permute.xlu0 1
  %41 = vperm.xlu0 %40, %v20
  %v42 = vpop.permute.xlu0 %41
  %v44 = vlaneseq
  %v45 = vshrl.u32 %v44, 7
  %v46 = vsub.s32 1, %v45
  %v47 = vrot.slane %v21, %v46
  %v48 = vmul.f32 %v42, %v47
  %v49 = vadd.f32 %v39, %v48
  %50 = vset.pattern.permute.xlu0 2
  %51 = vperm.xlu0 %50, %v20
  %v52 = vpop.permute.xlu0 %51
  %v54 = vlaneseq
  %v55 = vshrl.u32 %v54, 7
  %v56 = vsub.s32 2, %v55
  %v57 = vrot.slane %v21, %v56
  %v58 = vmul.f32 %v52, %v57
  %v59 = vadd.f32 %v49, %v58
  %60 = vset.pattern.permute.xlu0 3
  %61 = vperm.xlu0 %60, %v20
  %v62 = vpop.permute.xlu0 %61
  %v64 = vlaneseq
  %v65 = vshrl.u32 %v64, 7
  %v66 = vsub.s32 3, %v65
  %v67 = vrot.slane %v21, %v66
  %v68 = vmul.f32 %v62, %v67
  %v69 = vadd.f32 %v59, %v68
  %v70 = vmax.f32 %v69, 0.0
  %v71 = vld [vmem:[%s3] sm:$0xff]
  %v72 = vld [vmem:[%s3 + $0x8] sm:$0xff]
  %v73 = vld [vmem:[%s3 + $0x10] sm:$0xff]
  %v74 = vld [vmem:[%s3 + $0x18] sm:$0xff]
  %v75 = vld [vmem:[%s3 + $0x20] sm:$0xff]
  %v76 = vld [vmem:[%s3 + $0x28] sm:$0xff]
  %v77 = vld [vmem:[%s3 + $0x30] sm:$0x3]
  %v78 = vld [vmem:[%s4] sm:$0x1]
  %v80 = vlaneseq
  %v81 = vshrl.u32 %v80, 7
  %v82 = vsub.s32 0, %v81
  %v83 = vrot.slane %v78, %v82
  %vm85 = vcmask 408576
  %v87 = vsel %vm85, %v70, 0
  %vm89 = vcmask 1041408
  %v91 = vsel %vm89, %v77, 0
  %93 = vmatprep.subr.mxu0 0.0
  %94 = vmatpush1.msra.mxu0 %v71
  %95 = vmatprep.subr.mxu0 0.0
  %96 = vmatpush1.msra.mxu0 %v72
  %97 = vmatprep.subr.mxu0 0.0
  %98 = vmatpush1.msra.mxu0 %v73
  %99 = vmatprep.subr.mxu0 0.0
  %100 = vmatpush1.msra.mxu0 %v74
  %101 = vmatprep.subr.mxu0 0.0
  %102 = vmatpush1.msra.mxu0 %v75
  %103 = vmatprep.subr.mxu0 0.0
  %104 = vmatpush1.msra.mxu0 %v76
  %105 = vmatprep.subr.mxu0 0.0
  %106 = vmatpush1.msra.mxu0 %v91
  %107 = vmatprep.subr.mxu0 0.0
  %108 = vmatpush1.msra.mxu0 0.0
  %109 = vmatprep.subr.mxu0 0.0
  %110 = vmatpush1.msra.mxu0 0.0
  %111 = vmatprep.subr.mxu0 0.0
  %112 = vmatpush1.msra.mxu0 0.0
  %113 = vmatprep.subr.mxu0 0.0
  %114 = vmatpush1.msra.mxu0 0.0
  %115 = vmatprep.subr.mxu0 0.0
  %116 = vmatpush1.msra.mxu0 0.0
  %117 = vmatprep.subr.mxu0 0.0
  %118 = vmatpush1.msra.mxu0 0.0
  %119 = vmatprep.subr.mxu0 0.0
  %120 = vmatpush1.msra.mxu0 0.0
  %121 = vmatprep.subr.mxu0 0.0
  %122 = vmatpush1.msra.mxu0 0.0
  %123 = vmatprep.subr.mxu0 0.0
  %124 = vmatpush1.msra.mxu0 0.0
  %125 = vmatprep.subr.mxu0 0.0
  %126 = vmatpush1.msra.mxu0 0.0
  %127 = vmatprep.subr.mxu0 0.0
  %128 = vmatpush1.msra.mxu0 0.0
  %129 = vmatprep.subr.mxu0 0.0
  %130 = vmatpush1.msra.mxu0 0.0
  %131 = vmatprep.subr.mxu0 0.0
  %132 = vmatpush1.msra.mxu0 0.0
  %133 = vmatprep.subr.mxu0 0.0
  %134 = vmatpush1.msra.mxu0 0.0
  %135 = vmatprep.subr.mxu0 0.0
  %136 = vmatpush1.msra.mxu0 0.0
  %137 = vmatprep.subr.mxu0 0.0
  %138 = vmatpush1.msra.mxu0 0.0
  %139 = vmatprep.subr.mxu0 0.0
  %140 = vmatpush1.msra.mxu0 0.0
  %141 = vmatprep.subr.mxu0 0.0
  %142 = vmatpush1.msra.mxu0 0.0
  %143 = vmatprep.subr.mxu0 0.0
  %144 = vmatpush1.msra.mxu0 0.0
  %145 = vmatprep.subr.mxu0 0.0
  %146 = vmatpush1.msra.mxu0 0.0
  %147 = vmatprep.subr.mxu0 0.0
  %148 = vmatpush1.msra.mxu0 0.0
  %149 = vmatprep.subr.mxu0 0.0
  %150 = vmatpush1.msra.mxu0 0.0
  %151 = vmatprep.subr.mxu0 0.0
  %152 = vmatpush1.msra.mxu0 0.0
  %153 = vmatprep.subr.mxu0 0.0
  %154 = vmatpush1.msra.mxu0 0.0
  %155 = vmatprep.subr.mxu0 0.0
  %156 = vmatpush1.msra.mxu0 0.0
  %157 = vmatprep.mubr.f32.mxu0 0.0
  %158 = vmatmul.mubr.f32.gmra.mrb[0].mxu0 %v87
  %v159 = vpop.f32.mrb[0].mxu0
  %v160 = vadd.f32 %v83, %v159
  %v161 = vpop.f32.mrb[0].mxu0
  %162 = vdwg.mxu0
  %vm163 = vcmask 15360
  %164 = vst.msk [vmem:[%s5] sm:$0xff] %vm163, %v160
  // Predicated region
  $region22: #{tpu_custom_call.1} parent=0 // pred_check
    _
  $region23: #{tpu_custom_call.1} parent=0 // pred_check_branch
    %166 = sbr.rel (0) target = $region25
  $region24: #{tpu_custom_call.1} parent=0 // pred_region
    _
  $region25: #{tpu_custom_call.1} parent=0 // pred_fallthru
    _
  // Predicated region
  $region26: #{tpu_custom_call.1} parent=0 // pred_check
    _
  $region27: #{tpu_custom_call.1} parent=0 // pred_check_branch
    %168 = sbr.rel (0) target = $region29
  $region28: #{tpu_custom_call.1} parent=0 // pred_region
    _
  $region29: #{tpu_custom_call.1} parent=0 // pred_fallthru
    _

</llo_original>
